<compile_context>
chip_gen: v7x
topology: tpu7x:2x2x1
jax: 0.10.0
libtpu: 0.0.40
codegen_flags: <defaults>
</compile_context>

<pallas_src>
import functools

import jax
import jax.numpy as jnp
from jax.experimental import pallas as pl
from jax.experimental.pallas import tpu as pltpu

_LANE = 128


def _round_up(v, m):
    return (v + m - 1) // m * m


def _gcn_fused_kernel(x_ref, adj_ref, w1_ref, b1_ref, w2_ref, b2_ref,
                      o_ref, h_ref, *, l1_aggregate_first, l2_aggregate_first):
    adj = adj_ref[...]                       # bf16 [N, N]; loaded once, reused by both layers
    # ---------------- layer 1: h = relu(adj @ x @ W1 + b1) ----------------
    if l1_aggregate_first:                   # F_in < hidden -> aggregate first (fewer FLOPs)
        ax = jnp.dot(adj, x_ref[...], preferred_element_type=jnp.float32)
        h = jnp.dot(ax.astype(w1_ref.dtype), w1_ref[...],
                    preferred_element_type=jnp.float32)
    else:                                    # transform first
        xw = jnp.dot(x_ref[...], w1_ref[...], preferred_element_type=jnp.float32)
        h = jnp.dot(adj, xw.astype(adj.dtype), preferred_element_type=jnp.float32)
    h = jnp.maximum(h + b1_ref[...], 0.0)    # bias + ReLU in f32 (VPU)
    # TODO(synk): nn.Dropout is identity in eval mode; training-mode dropout
    # would need pltpu.prng_seed + pltpu.prng_random_bits masking scaled by 1/(1-p).
    h_ref[...] = h.astype(h_ref.dtype)       # intermediate stays in VMEM scratch (no HBM trip)
    # ---------------- layer 2: out = adj @ h @ W2 + b2 ----------------
    if l2_aggregate_first:
        ah = jnp.dot(adj, h_ref[...], preferred_element_type=jnp.float32)
        out = jnp.dot(ah.astype(w2_ref.dtype), w2_ref[...],
                      preferred_element_type=jnp.float32)
    else:                                    # hidden > num_classes -> transform first
        hw = jnp.dot(h_ref[...], w2_ref[...], preferred_element_type=jnp.float32)
        out = jnp.dot(adj, hw.astype(adj.dtype), preferred_element_type=jnp.float32)
    o_ref[...] = (out + b2_ref[...]).astype(o_ref.dtype)


def gcn_model_forward(x, adj, params, *, compute_dtype=jnp.bfloat16):
    """Fused two-layer GCN forward (eval mode)."""
    w1, b1, w2, b2 = params
    n, f_in = x.shape
    hidden = w1.shape[1]
    num_classes = w2.shape[1]

    # Pad feature dims to the 128-lane width (zero padding is mathematically
    # inert through bias/ReLU/matmuls); slice the result back afterwards.
    h_pad = _round_up(hidden, _LANE)
    c_pad = _round_up(num_classes, _LANE)

    w1_p = jnp.zeros((f_in, h_pad), w1.dtype).at[:, :hidden].set(w1)
    b1_p = jnp.zeros((1, h_pad), jnp.float32).at[:, :hidden].set(b1.astype(jnp.float32))
    w2_p = jnp.zeros((h_pad, c_pad), w2.dtype).at[:hidden, :num_classes].set(w2)
    b2_p = jnp.zeros((1, c_pad), jnp.float32).at[:, :num_classes].set(b2.astype(jnp.float32))

    # bf16 operands for the MXU; accumulation stays f32 inside the kernel.
    x_c = x.astype(compute_dtype)
    adj_c = adj.astype(compute_dtype)
    w1_c = w1_p.astype(compute_dtype)
    w2_c = w2_p.astype(compute_dtype)

    # Shape-dependent matmul ordering (minimizes MXU work).
    l1_aggregate_first = f_in < hidden
    l2_aggregate_first = hidden < num_classes

    if l1_aggregate_first:
        l1_flops = 2 * n * n * f_in + 2 * n * f_in * h_pad
    else:
        l1_flops = 2 * n * f_in * h_pad + 2 * n * n * h_pad
    if l2_aggregate_first:
        l2_flops = 2 * n * n * h_pad + 2 * n * h_pad * c_pad
    else:
        l2_flops = 2 * n * h_pad * c_pad + 2 * n * n * c_pad

    bytes_accessed = (x_c.size * x_c.dtype.itemsize
                      + adj_c.size * adj_c.dtype.itemsize
                      + w1_c.size * w1_c.dtype.itemsize
                      + w2_c.size * w2_c.dtype.itemsize
                      + b1_p.size * 4 + b2_p.size * 4
                      + n * c_pad * 4)

    kernel = functools.partial(
        _gcn_fused_kernel,
        l1_aggregate_first=l1_aggregate_first,
        l2_aggregate_first=l2_aggregate_first,
    )

    out_p = pl.pallas_call(
        kernel,
        out_shape=jax.ShapeDtypeStruct((n, c_pad), jnp.float32),
        grid=(1,),
        # Full-array blocks: these shapes fit comfortably in VMEM at N=128.
        # TODO(synk): for large N, switch to row-tiled BlockSpecs on adj/x/out
        # with a "parallel" node axis (2 TCs on v7x) and re-derive the adj tile
        # size for the 32 MiB scoped / 64 MiB physical VMEM budget on v7x.
        in_specs=[
            pl.BlockSpec((n, f_in), lambda i: (0, 0)),
            pl.BlockSpec((n, n), lambda i: (0, 0)),
            pl.BlockSpec((f_in, h_pad), lambda i: (0, 0)),
            pl.BlockSpec((1, h_pad), lambda i: (0, 0)),
            pl.BlockSpec((h_pad, c_pad), lambda i: (0, 0)),
            pl.BlockSpec((1, c_pad), lambda i: (0, 0)),
        ],
        out_specs=pl.BlockSpec((n, c_pad), lambda i: (0, 0)),
        scratch_shapes=[pltpu.VMEM((n, h_pad), compute_dtype)],
        compiler_params=pltpu.CompilerParams(
            dimension_semantics=("arbitrary",),
        ),
        cost_estimate=pl.CostEstimate(
            flops=l1_flops + l2_flops,
            transcendentals=0,
            bytes_accessed=bytes_accessed,
        ),
    )(x_c, adj_c, w1_c, b1_p, w2_c, b2_p)

    return out_p[:, :num_classes]


def init_params(key, node_features, hidden_dim, num_classes, dtype=jnp.float32):
    k1, k2, k3, k4 = jax.random.split(key, 4)
    scale1 = 1.0 / jnp.sqrt(node_features)
    scale2 = 1.0 / jnp.sqrt(hidden_dim)
    w1 = jax.random.uniform(k1, (node_features, hidden_dim), dtype, -scale1, scale1)
    b1 = jax.random.uniform(k2, (1, hidden_dim), dtype, -scale1, scale1)
    w2 = jax.random.uniform(k3, (hidden_dim, num_classes), dtype, -scale2, scale2)
    b2 = jax.random.uniform(k4, (1, num_classes), dtype, -scale2, scale2)
    return w1, b1, w2, b2


if __name__ == "__main__":
    key = jax.random.PRNGKey(0)
    kx, kadj, kp = jax.random.split(key, 3)

    num_nodes = 128
    node_features = 32
    hidden_dim = 64
    num_classes = 16

    # Node feature matrix [N, F].
    x = jax.random.normal(kx, (num_nodes, node_features), jnp.float32)

    # Symmetric normalized adjacency with self loops: D^-1/2 (A + I) D^-1/2.
    a = (jax.random.uniform(kadj, (num_nodes, num_nodes)) < 0.05).astype(jnp.float32)
    a = jnp.maximum(a, a.T)
    a = a + jnp.eye(num_nodes, dtype=jnp.float32)
    deg = jnp.sum(a, axis=1)
    d_inv_sqrt = 1.0 / jnp.sqrt(deg)
    adj = a * d_inv_sqrt[:, None] * d_inv_sqrt[None, :]

    params = init_params(kp, node_features, hidden_dim, num_classes)

    out = gcn_model_forward(x, adj, params)
    jax.block_until_ready(out)
    assert out.shape == (num_nodes, num_classes)

    # Reference 1: mirrors the kernel's bf16-operand / f32-accumulate math
    # (aggregate-first layer 1, transform-first layer 2 for these shapes).
    w1, b1, w2, b2 = params
    cd = jnp.bfloat16
    xb, ab = x.astype(cd), adj.astype(cd)
    ax = jnp.dot(ab, xb, preferred_element_type=jnp.float32)
    h = jnp.dot(ax.astype(cd), w1.astype(cd), preferred_element_type=jnp.float32)
    h = jnp.maximum(h + b1, 0.0).astype(cd)
    hw = jnp.dot(h, w2.astype(cd), preferred_element_type=jnp.float32)
    ref_bf16 = jnp.dot(ab, hw.astype(cd), preferred_element_type=jnp.float32) + b2
    assert jnp.allclose(out, ref_bf16, atol=2e-2, rtol=2e-2)

    # Reference 2: pure f32 math (loose tolerance because operands are bf16).
    ref_f32 = jnp.maximum(adj @ (x @ w1) + b1, 0.0)
    ref_f32 = adj @ (ref_f32 @ w2) + b2
    assert jnp.allclose(out, ref_f32, atol=1e-1, rtol=1e-1)

    print("KERNEL_OK")
</pallas_src>

<mosaic_0001>
module attributes {stable_mosaic.version = 11 : i64} {
  func.func @_gcn_fused_kernel(%arg0: i32, %arg1: memref<128x32xbf16, #tpu.memory_space<vmem>>, %arg2: memref<128x128xbf16, #tpu.memory_space<vmem>>, %arg3: memref<32x128xbf16, #tpu.memory_space<vmem>>, %arg4: memref<1x128xf32, #tpu.memory_space<vmem>>, %arg5: memref<128x128xbf16, #tpu.memory_space<vmem>>, %arg6: memref<1x128xf32, #tpu.memory_space<vmem>>, %arg7: memref<128x128xf32, #tpu.memory_space<vmem>>, %arg8: memref<128x128xbf16, #tpu.memory_space<vmem>>) attributes {dimension_semantics = [#tpu.dimension_semantics<arbitrary>], iteration_bounds = array<i64: 1>, scalar_prefetch = 0 : i64, scratch_operands = 1 : i64, tpu.core_type = #tpu.core_type<tc>, window_params = [{pipeline_mode = #tpu.pipeline_mode<synchronous>, transform_indices = @transform_0, window_bounds = array<i64: 128, 32>}, {pipeline_mode = #tpu.pipeline_mode<synchronous>, transform_indices = @transform_1, window_bounds = array<i64: 128, 128>}, {pipeline_mode = #tpu.pipeline_mode<synchronous>, transform_indices = @transform_2, window_bounds = array<i64: 32, 128>}, {pipeline_mode = #tpu.pipeline_mode<synchronous>, transform_indices = @transform_3, window_bounds = array<i64: 1, 128>}, {pipeline_mode = #tpu.pipeline_mode<synchronous>, transform_indices = @transform_4, window_bounds = array<i64: 128, 128>}, {pipeline_mode = #tpu.pipeline_mode<synchronous>, transform_indices = @transform_5, window_bounds = array<i64: 1, 128>}, {pipeline_mode = #tpu.pipeline_mode<synchronous>, transform_indices = @transform_6, window_bounds = array<i64: 128, 128>}]} {
    %c0 = arith.constant 0 : index
    %c0_0 = arith.constant 0 : index
    %0 = vector.load %arg2[%c0, %c0_0] : memref<128x128xbf16, #tpu.memory_space<vmem>>, vector<128x128xbf16>
    %c0_1 = arith.constant 0 : index
    %c0_2 = arith.constant 0 : index
    %1 = vector.load %arg1[%c0_1, %c0_2] : memref<128x32xbf16, #tpu.memory_space<vmem>>, vector<128x32xbf16>
    %cst = arith.constant dense<0.000000e+00> : vector<128x32xf32>
    %2 = tpu.matmul %0, %1, %cst {dimension_numbers = #tpu.dot_dimension_numbers<[1], [0], [0], [1], [0, 0, 1, 1], [], []>} : vector<128x128xbf16>, vector<128x32xbf16>, vector<128x32xf32> -> vector<128x32xf32>
    %3 = arith.truncf %2 : vector<128x32xf32> to vector<128x32xbf16>
    %c0_3 = arith.constant 0 : index
    %c0_4 = arith.constant 0 : index
    %4 = vector.load %arg3[%c0_3, %c0_4] : memref<32x128xbf16, #tpu.memory_space<vmem>>, vector<32x128xbf16>
    %cst_5 = arith.constant dense<0.000000e+00> : vector<128x128xf32>
    %5 = tpu.matmul %3, %4, %cst_5 {dimension_numbers = #tpu.dot_dimension_numbers<[1], [0], [0], [1], [0, 0, 1, 1], [], []>} : vector<128x32xbf16>, vector<32x128xbf16>, vector<128x128xf32> -> vector<128x128xf32>
    %c0_6 = arith.constant 0 : index
    %c0_7 = arith.constant 0 : index
    %6 = vector.load %arg4[%c0_6, %c0_7] : memref<1x128xf32, #tpu.memory_space<vmem>>, vector<1x128xf32>
    %7 = vector.broadcast %6 : vector<1x128xf32> to vector<128x128xf32>
    %8 = arith.addf %5, %7 : vector<128x128xf32>
    %cst_8 = arith.constant 0.000000e+00 : f32
    %9 = vector.broadcast %cst_8 : f32 to vector<128x128xf32>
    %10 = arith.maximumf %8, %9 : vector<128x128xf32>
    %11 = arith.truncf %10 : vector<128x128xf32> to vector<128x128xbf16>
    %c0_9 = arith.constant 0 : index
    %c0_10 = arith.constant 0 : index
    %12 = vector.load %arg8[%c0_9, %c0_10] : memref<128x128xbf16, #tpu.memory_space<vmem>>, vector<128x128xbf16>
    tpu.vector_store %arg8[%c0_9, %c0_10], %11 {strides = array<i32>} : memref<128x128xbf16, #tpu.memory_space<vmem>>, vector<128x128xbf16>,
    %c0_11 = arith.constant 0 : index
    %c0_12 = arith.constant 0 : index
    %13 = vector.load %arg8[%c0_11, %c0_12] : memref<128x128xbf16, #tpu.memory_space<vmem>>, vector<128x128xbf16>
    %c0_13 = arith.constant 0 : index
    %c0_14 = arith.constant 0 : index
    %14 = vector.load %arg5[%c0_13, %c0_14] : memref<128x128xbf16, #tpu.memory_space<vmem>>, vector<128x128xbf16>
    %cst_15 = arith.constant dense<0.000000e+00> : vector<128x128xf32>
    %15 = tpu.matmul %13, %14, %cst_15 {dimension_numbers = #tpu.dot_dimension_numbers<[1], [0], [0], [1], [0, 0, 1, 1], [], []>} : vector<128x128xbf16>, vector<128x128xbf16>, vector<128x128xf32> -> vector<128x128xf32>
    %16 = arith.truncf %15 : vector<128x128xf32> to vector<128x128xbf16>
    %cst_16 = arith.constant dense<0.000000e+00> : vector<128x128xf32>
    %17 = tpu.matmul %0, %16, %cst_16 {dimension_numbers = #tpu.dot_dimension_numbers<[1], [0], [0], [1], [0, 0, 1, 1], [], []>} : vector<128x128xbf16>, vector<128x128xbf16>, vector<128x128xf32> -> vector<128x128xf32>
    %c0_17 = arith.constant 0 : index
    %c0_18 = arith.constant 0 : index
    %18 = vector.load %arg6[%c0_17, %c0_18] : memref<1x128xf32, #tpu.memory_space<vmem>>, vector<1x128xf32>
    %19 = vector.broadcast %18 : vector<1x128xf32> to vector<128x128xf32>
    %20 = arith.addf %17, %19 : vector<128x128xf32>
    %c0_19 = arith.constant 0 : index
    %c0_20 = arith.constant 0 : index
    %21 = vector.load %arg7[%c0_19, %c0_20] : memref<128x128xf32, #tpu.memory_space<vmem>>, vector<128x128xf32>
    tpu.vector_store %arg7[%c0_19, %c0_20], %20 {strides = array<i32>} : memref<128x128xf32, #tpu.memory_space<vmem>>, vector<128x128xf32>,
    return
  }
  func.func @transform_0(%arg0: i32) -> (i32, i32) {
    %c0_i32 = arith.constant 0 : i32
    %c0_i32_0 = arith.constant 0 : i32
    %c0_i32_1 = arith.constant 0 : i32
    return %c0_i32, %c0_i32_0 : i32, i32
  }
  func.func @transform_1(%arg0: i32) -> (i32, i32) {
    %c0_i32 = arith.constant 0 : i32
    %c0_i32_0 = arith.constant 0 : i32
    %c0_i32_1 = arith.constant 0 : i32
    return %c0_i32, %c0_i32_0 : i32, i32
  }
  func.func @transform_2(%arg0: i32) -> (i32, i32) {
    %c0_i32 = arith.constant 0 : i32
    %c0_i32_0 = arith.constant 0 : i32
    %c0_i32_1 = arith.constant 0 : i32
    return %c0_i32, %c0_i32_0 : i32, i32
  }
  func.func @transform_3(%arg0: i32) -> (i32, i32) {
    %c0_i32 = arith.constant 0 : i32
    %c0_i32_0 = arith.constant 0 : i32
    %c0_i32_1 = arith.constant 0 : i32
    return %c0_i32, %c0_i32_0 : i32, i32
  }
  func.func @transform_4(%arg0: i32) -> (i32, i32) {
    %c0_i32 = arith.constant 0 : i32
    %c0_i32_0 = arith.constant 0 : i32
    %c0_i32_1 = arith.constant 0 : i32
    return %c0_i32, %c0_i32_0 : i32, i32
  }
  func.func @transform_5(%arg0: i32) -> (i32, i32) {
    %c0_i32 = arith.constant 0 : i32
    %c0_i32_0 = arith.constant 0 : i32
    %c0_i32_1 = arith.constant 0 : i32
    return %c0_i32, %c0_i32_0 : i32, i32
  }
  func.func @transform_6(%arg0: i32) -> (i32, i32) {
    %c0_i32 = arith.constant 0 : i32
    %c0_i32_0 = arith.constant 0 : i32
    %c0_i32_1 = arith.constant 0 : i32
    return %c0_i32, %c0_i32_0 : i32, i32
  }
}

</mosaic_0001>

<llo_original>
// kernel: tpu_custom_call.1
$region0: #{tpu_custom_call.1}
  #allocation0 [shape = 'u32[]', space=smem, size = 0x4, offset = 0x4, fixed_abs, tag = 'smem constant byte address 0x4 - core index']
  #allocation1 [shape = 'u32[144,128]{1,0:T(1,128)}', space=vmem, size = 0x12000, scoped, tag = 'internal scratch']
  #allocation2 [shape = 'bf16[128,128]{1,0:T(16,128)(2,1)}', space=vmem, size = 0x8000, scoped, tag = 'scratch operand']
  %s0 = inlined_call_operand.vmem [shape: bf16[128,32], index: 0, kind: input, shape index: {}]
  %s1 = inlined_call_operand.vmem [shape: bf16[128,128], index: 1, kind: input, shape index: {}]
  %s2 = inlined_call_operand.vmem [shape: bf16[32,128], index: 2, kind: input, shape index: {}]
  %s3 = inlined_call_operand.vmem [shape: f32[1,128], index: 3, kind: input, shape index: {}]
  %s4 = inlined_call_operand.hbm [shape: bf16[128,128], index: 4, kind: input, shape index: {}]
  %s5 = inlined_call_operand.vmem [shape: f32[1,128], index: 5, kind: input, shape index: {}]
  %s6 = inlined_call_operand.hbm [shape: f32[128,128], index: 6, kind: output, shape index: {}]
  %s7 = sld [smem:[#allocation0]]
  $region38: #{tpu_custom_call.1} parent=0
    _
  %s9 = ssub.s32 1, %s7
  %s10 = scalar_select 0, %s9, %s7
  $region1: #{tpu_custom_call.1} parent=0
    #allocation3 [shape = 'u8[32768]{0}', space=vmem, size = 0x8000, scoped, tag = 'input window, operand 4, single buffered']
    #allocation4 [shape = 's32[1]{0}', space=sflag, size = 0x4, scoped, tag = 'scoped memory for tpu_custom_call.1']
    #allocation5 [shape = 's32[1]{0}', space=sflag, size = 0x4, scoped, tag = 'scoped memory for tpu_custom_call.1']
    #allocation6 [shape = 'u8[65536]{0}', space=vmem, size = 0x10000, scoped, tag = 'output window, operand 0, single buffered']
    %11 = vsyncpa [#allocation4], 0
    %12 = vsyncpa [#allocation5], 0
    // Predicated region
    $region2: #{tpu_custom_call.1} parent=1 // pred_check
      _
    $region3: #{tpu_custom_call.1} parent=1 // pred_check_branch
      %14 = sbr.rel (0) target = $region5
    $region4: #{tpu_custom_call.1} parent=1 // pred_region
      _
    $region5: #{tpu_custom_call.1} parent=1 // pred_fallthru
      _
    // Predicated region
    $region6: #{tpu_custom_call.1} parent=1 // pred_check
      _
    $region7: #{tpu_custom_call.1} parent=1 // pred_check_branch
      %16 = sbr.rel (0) target = $region9
    $region8: #{tpu_custom_call.1} parent=1 // pred_region
      _
    $region9: #{tpu_custom_call.1} parent=1 // pred_fallthru
      _
    // Predicated region
    $region10: #{tpu_custom_call.1} parent=1 // pred_check
      _
    $region11: #{tpu_custom_call.1} parent=1 // pred_check_branch
      %18 = sbr.rel (0) target = $region13
    $region12: #{tpu_custom_call.1} parent=1 // pred_region
      _
    $region13: #{tpu_custom_call.1} parent=1 // pred_fallthru
      _
    // Predicated region
    $region14: #{tpu_custom_call.1} parent=1 // pred_check
      _
    $region15: #{tpu_custom_call.1} parent=1 // pred_check_branch
      %20 = sbr.rel (0) target = $region17
    $region16: #{tpu_custom_call.1} parent=1 // pred_region
      _
    $region17: #{tpu_custom_call.1} parent=1 // pred_fallthru
      _
    // Predicated region
    $region18: #{tpu_custom_call.1} parent=1 // pred_check
      _
    $region19: #{tpu_custom_call.1} parent=1 // pred_check_branch
      %22 = sbr.rel (0) target = $region21
    $region20: #{tpu_custom_call.1} parent=1 // pred_region
      %s24 = ssub.s32 1024, 1024
      %25 = vsyncadd [#allocation4], %s24
      %s26 = sshll.u32 [#allocation3], 4
      %s27 = int_to_ptr.vmem [resolvable:$true] %s26
      %32 = dma.hbm_to_vmem [thread:$0]  %s4, 1024, %s27, [#allocation4], 64, 64, 4
    $region21: #{tpu_custom_call.1} parent=1 // pred_fallthru
      _
    // Predicated region
    $region22: #{tpu_custom_call.1} parent=1 // pred_check
      _
    $region23: #{tpu_custom_call.1} parent=1 // pred_check_branch
      %34 = sbr.rel (0) target = $region25
    $region24: #{tpu_custom_call.1} parent=1 // pred_region
      _
    $region25: #{tpu_custom_call.1} parent=1 // pred_fallthru
      _
    // Predicated region
    $region26: #{tpu_custom_call.1} parent=1 // pred_check
      _
    $region27: #{tpu_custom_call.1} parent=1 // pred_check_branch
      %36 = sbr.rel (0) target = $region29
    $region28: #{tpu_custom_call.1} parent=1 // pred_region
      %37 = dma.done [#allocation4], 1024
    $region29: #{tpu_custom_call.1} parent=1 // pred_fallthru
      _
    %v39 = vld [vmem:[%s1] sm:$0xf]
    %v40 = vld [vmem:[%s1 + $0x4] sm:$0xf]
    %v41 = vld [vmem:[%s1 + $0x8] sm:$0xf]
    %v42 = vld [vmem:[%s1 + $0xc] sm:$0xf]
    %v43 = vld [vmem:[%s1 + $0x10] sm:$0xf]
    %v44 = vld [vmem:[%s1 + $0x14] sm:$0xf]
    %v45 = vld [vmem:[%s1 + $0x18] sm:$0xf]
    %v46 = vld [vmem:[%s1 + $0x1c] sm:$0xf]
    %v47 = vld [vmem:[%s1 + $0x20] sm:$0xf]
    %v48 = vld [vmem:[%s1 + $0x24] sm:$0xf]
    %v49 = vld [vmem:[%s1 + $0x28] sm:$0xf]
    %v50 = vld [vmem:[%s1 + $0x2c] sm:$0xf]
    %v51 = vld [vmem:[%s1 + $0x30] sm:$0xf]
    %v52 = vld [vmem:[%s1 + $0x34] sm:$0xf]
    %v53 = vld [vmem:[%s1 + $0x38] sm:$0xf]
    %v54 = vld [vmem:[%s1 + $0x3c] sm:$0xf]
    %v55 = vld [vmem:[%s0] sm:$0xf]
    %v56 = vld [vmem:[%s0 + $0x4] sm:$0xf]
    %v57 = vld [vmem:[%s0 + $0x8] sm:$0xf]
    %v58 = vld [vmem:[%s0 + $0xc] sm:$0xf]
    %v59 = vld [vmem:[%s0 + $0x10] sm:$0xf]
    %v60 = vld [vmem:[%s0 + $0x14] sm:$0xf]
    %v61 = vld [vmem:[%s0 + $0x18] sm:$0xf]
    %v62 = vld [vmem:[%s0 + $0x1c] sm:$0xf]
    %v63 = vld [vmem:[%s0 + $0x20] sm:$0xf]
    %v64 = vld [vmem:[%s0 + $0x24] sm:$0xf]
    %v65 = vld [vmem:[%s0 + $0x28] sm:$0xf]
    %v66 = vld [vmem:[%s0 + $0x2c] sm:$0xf]
    %v67 = vld [vmem:[%s0 + $0x30] sm:$0xf]
    %v68 = vld [vmem:[%s0 + $0x34] sm:$0xf]
    %v69 = vld [vmem:[%s0 + $0x38] sm:$0xf]
    %v70 = vld [vmem:[%s0 + $0x3c] sm:$0xf]
    %v87 = vunpack.c.l.b16 %v39
    %v88 = vunpack.c.l.b16 %v40
    %v89 = vunpack.c.l.b16 %v41
    %v90 = vunpack.c.l.b16 %v42
    %v91 = vunpack.c.l.b16 %v43
    %v92 = vunpack.c.l.b16 %v44
    %v93 = vunpack.c.l.b16 %v45
    %v94 = vunpack.c.l.b16 %v46
    %v95 = vunpack.c.l.b16 %v47
    %v96 = vunpack.c.l.b16 %v48
    %v97 = vunpack.c.l.b16 %v49
    %v98 = vunpack.c.l.b16 %v50
    %v99 = vunpack.c.l.b16 %v51
    %v100 = vunpack.c.l.b16 %v52
    %v101 = vunpack.c.l.b16 %v53
    %v102 = vunpack.c.l.b16 %v54
    %v103 = vpack.c.b16 %v88, %v87
    %v104 = vpack.c.b16 %v90, %v89
    %v105 = vpack.c.b16 %v92, %v91
    %v106 = vpack.c.b16 %v94, %v93
    %v107 = vpack.c.b16 %v96, %v95
    %v108 = vpack.c.b16 %v98, %v97
    %v109 = vpack.c.b16 %v100, %v99
    %v110 = vpack.c.b16 %v102, %v101
    %v135 = vunpack.c.l.b16 %v55
    %v136 = vunpack.c.l.b16 %v56
    %v137 = vunpack.c.l.b16 %v57
    %v138 = vunpack.c.l.b16 %v58
    %v139 = vunpack.c.l.b16 %v59
    %v140 = vunpack.c.l.b16 %v60
    %v141 = vunpack.c.l.b16 %v61
    %v142 = vunpack.c.l.b16 %v62
    %v143 = vunpack.c.l.b16 %v63
    %v144 = vunpack.c.l.b16 %v64
    %v145 = vunpack.c.l.b16 %v65
    %v146 = vunpack.c.l.b16 %v66
    %v147 = vunpack.c.l.b16 %v67
    %v148 = vunpack.c.l.b16 %v68
    %v149 = vunpack.c.l.b16 %v69
    %v150 = vunpack.c.l.b16 %v70
    %v151 = vpack.c.b16 %v136, %v135
    %v152 = vpack.c.b16 %v138, %v137
    %v153 = vpack.c.b16 %v140, %v139
    %v154 = vpack.c.b16 %v142, %v141
    %v155 = vpack.c.b16 %v144, %v143
    %v156 = vpack.c.b16 %v146, %v145
    %v157 = vpack.c.b16 %v148, %v147
    %v158 = vpack.c.b16 %v150, %v149
    %167 = vmatprep.subr.bf16.mxu0 0
    %168 = vmatpush1.bf16.msra.mxu0 %v151
    %169 = vmatprep.subr.bf16.mxu0 0
    %170 = vmatpush1.bf16.msra.mxu0 %v152
    %171 = vmatprep.subr.bf16.mxu0 0
    %172 = vmatpush1.bf16.msra.mxu0 %v153
    %173 = vmatprep.subr.bf16.mxu0 0
    %174 = vmatpush1.bf16.msra.mxu0 %v154
    %175 = vmatprep.subr.bf16.mxu0 0
    %176 = vmatpush1.bf16.msra.mxu0 %v155
    %177 = vmatprep.subr.bf16.mxu0 0
    %178 = vmatpush1.bf16.msra.mxu0 %v156
    %179 = vmatprep.subr.bf16.mxu0 0
    %180 = vmatpush1.bf16.msra.mxu0 %v157
    %181 = vmatprep.subr.bf16.mxu0 0
    %182 = vmatpush1.bf16.msra.mxu0 %v158
    %183 = vmatprep.subr.bf16.mxu0 0
    %184 = vmatpush1.bf16.msra.mxu0 0
    %185 = vmatprep.subr.bf16.mxu0 0
    %186 = vmatpush1.bf16.msra.mxu0 0
    %187 = vmatprep.subr.bf16.mxu0 0
    %188 = vmatpush1.bf16.msra.mxu0 0
    %189 = vmatprep.subr.bf16.mxu0 0
    %190 = vmatpush1.bf16.msra.mxu0 0
    %191 = vmatprep.subr.bf16.mxu0 0
    %192 = vmatpush1.bf16.msra.mxu0 0
    %193 = vmatprep.subr.bf16.mxu0 0
    %194 = vmatpush1.bf16.msra.mxu0 0
    %195 = vmatprep.subr.bf16.mxu0 0
    %196 = vmatpush1.bf16.msra.mxu0 0
    %197 = vmatprep.subr.bf16.mxu0 0
    %198 = vmatpush1.bf16.msra.mxu0 0
    %199 = vmatprep.mubr.bf16.mxu0 0
    %200 = vmatmul.mubr.bf16.gmra.mrb[0].mxu0 %v103
    %v201 = vpop.f32.mrb[0].mxu0
    %v202 = vadd.f32 0.0, %v201
    %v203 = vpop.f32.mrb[0].mxu0
    %v204 = vpop.f32.mrb[0].mxu0
    %v205 = vadd.f32 0.0, %v204
    %v206 = vpop.f32.mrb[0].mxu0
    %207 = vmatprep.mubr.bf16.mxu0 0
    %208 = vmatmul.mubr.bf16.gmra.mrb[0].mxu0 %v104
    %v209 = vpop.f32.mrb[0].mxu0
    %v210 = vadd.f32 0.0, %v209
    %v211 = vpop.f32.mrb[0].mxu0
    %v212 = vpop.f32.mrb[0].mxu0
    %v213 = vadd.f32 0.0, %v212
    %v214 = vpop.f32.mrb[0].mxu0
    %215 = vmatprep.mubr.bf16.mxu0 0
    %216 = vmatmul.mubr.bf16.gmra.mrb[0].mxu0 %v105
    %v217 = vpop.f32.mrb[0].mxu0
    %v218 = vadd.f32 0.0, %v217
    %v219 = vpop.f32.mrb[0].mxu0
    %v220 = vpop.f32.mrb[0].mxu0
    %v221 = vadd.f32 0.0, %v220
    %v222 = vpop.f32.mrb[0].mxu0
    %223 = vmatprep.mubr.bf16.mxu0 0
    %224 = vmatmul.mubr.bf16.gmra.mrb[0].mxu0 %v106
    %v225 = vpop.f32.mrb[0].mxu0
    %v226 = vadd.f32 0.0, %v225
    %v227 = vpop.f32.mrb[0].mxu0
    %v228 = vpop.f32.mrb[0].mxu0
    %v229 = vadd.f32 0.0, %v228
    %v230 = vpop.f32.mrb[0].mxu0
    %231 = vmatprep.mubr.bf16.mxu0 0
    %232 = vmatmul.mubr.bf16.gmra.mrb[0].mxu0 %v107
    %v233 = vpop.f32.mrb[0].mxu0
    %v234 = vadd.f32 0.0, %v233
    %v235 = vpop.f32.mrb[0].mxu0
    %v236 = vpop.f32.mrb[0].mxu0
    %v237 = vadd.f32 0.0, %v236
    %v238 = vpop.f32.mrb[0].mxu0
    %239 = vmatprep.mubr.bf16.mxu0 0
    %240 = vmatmul.mubr.bf16.gmra.mrb[0].mxu0 %v108
    %v241 = vpop.f32.mrb[0].mxu0
    %v242 = vadd.f32 0.0, %v241
    %v243 = vpop.f32.mrb[0].mxu0
    %v244 = vpop.f32.mrb[0].mxu0
    %v245 = vadd.f32 0.0, %v244
    %v246 = vpop.f32.mrb[0].mxu0
    %247 = vmatprep.mubr.bf16.mxu0 0
    %248 = vmatmul.mubr.bf16.gmra.mrb[0].mxu0 %v109
    %v249 = vpop.f32.mrb[0].mxu0
    %v250 = vadd.f32 0.0, %v249
    %v251 = vpop.f32.mrb[0].mxu0
    %v252 = vpop.f32.mrb[0].mxu0
    %v253 = vadd.f32 0.0, %v252
    %v254 = vpop.f32.mrb[0].mxu0
    %255 = vmatprep.mubr.bf16.mxu0 0
    %256 = vmatmul.mubr.bf16.gmra.mrb[0].mxu0 %v110
    %v257 = vpop.f32.mrb[0].mxu0
    %v258 = vadd.f32 0.0, %v257
    %v259 = vpop.f32.mrb[0].mxu0
    %v260 = vpop.f32.mrb[0].mxu0
    %v261 = vadd.f32 0.0, %v260
    %v262 = vpop.f32.mrb[0].mxu0
    %263 = vdwg.mxu0
    %v264 = vpack.c.bf16 %v205, %v202
    %v265 = vpack.c.bf16 %v213, %v210
    %v266 = vpack.c.bf16 %v221, %v218
    %v267 = vpack.c.bf16 %v229, %v226
    %v268 = vpack.c.bf16 %v237, %v234
    %v269 = vpack.c.bf16 %v245, %v242
    %v270 = vpack.c.bf16 %v253, %v250
    %v271 = vpack.c.bf16 %v261, %v258
    %v272 = vld [vmem:[%s2] sm:$0xf]
    %v273 = vld [vmem:[%s2 + $0x4] sm:$0xf]
    %v274 = vld [vmem:[%s2 + $0x8] sm:$0xf]
    %v275 = vld [vmem:[%s2 + $0xc] sm:$0xf]
    %v276 = vld [vmem:[%s3] sm:$0x1]
    %v278 = vlaneseq
    %v279 = vshrl.u32 %v278, 7
    %v280 = vsub.s32 0, %v279
    %v281 = vrot.slane %v276, %v280
    %v287 = vunpack.c.l.b16 %v272
    %v288 = vunpack.c.l.b16 %v273
    %v289 = vunpack.c.l.b16 %v274
    %v290 = vunpack.c.l.b16 %v275
    %v291 = vpack.c.b16 %v288, %v287
    %v292 = vpack.c.b16 %v290, %v289
    %vm295 = vcmask 261120
    %v297 = vsel %vm295, %v264, 0
    %v300 = vsel %vm295, %v265, 0
    %v303 = vsel %vm295, %v266, 0
    %v306 = vsel %vm295, %v267, 0
    %v309 = vsel %vm295, %v268, 0
    %v312 = vsel %vm295, %v269, 0
    %v315 = vsel %vm295, %v270, 0
    %v318 = vsel %vm295, %v271, 0
    %320 = vmatprep.subr.bf16.mxu0 0
    %321 = vmatpush1.bf16.msra.mxu0 %v291
    %322 = vmatprep.subr.bf16.mxu0 0
    %323 = vmatpush1.bf16.msra.mxu0 %v292
    %324 = vmatprep.subr.bf16.mxu0 0
    %325 = vmatpush1.bf16.msra.mxu0 0
    %326 = vmatprep.subr.bf16.mxu0 0
    %327 = vmatpush1.bf16.msra.mxu0 0
    %328 = vmatprep.subr.bf16.mxu0 0
    %329 = vmatpush1.bf16.msra.mxu0 0
    %330 = vmatprep.subr.bf16.mxu0 0
    %331 = vmatpush1.bf16.msra.mxu0 0
    %332 = vmatprep.subr.bf16.mxu0 0
    %333 = vmatpush1.bf16.msra.mxu0 0
    %334 = vmatprep.subr.bf16.mxu0 0
    %335 = vmatpush1.bf16.msra.mxu0 0
    %336 = vmatprep.subr.bf16.mxu0 0
    %337 = vmatpush1.bf16.msra.mxu0 0
    %338 = vmatprep.subr.bf16.mxu0 0
    %339 = vmatpush1.bf16.msra.mxu0 0
    %340 = vmatprep.subr.bf16.mxu0 0
    %341 = vmatpush1.bf16.msra.mxu0 0
    %342 = vmatprep.subr.bf16.mxu0 0
    %343 = vmatpush1.bf16.msra.mxu0 0
    %344 = vmatprep.subr.bf16.mxu0 0
    %345 = vmatpush1.bf16.msra.mxu0 0
    %346 = vmatprep.subr.bf16.mxu0 0
    %347 = vmatpush1.bf16.msra.mxu0 0
    %348 = vmatprep.subr.bf16.mxu0 0
    %349 = vmatpush1.bf16.msra.mxu0 0
    %350 = vmatprep.subr.bf16.mxu0 0
    %351 = vmatpush1.bf16.msra.mxu0 0
    %352 = vmatprep.mubr.bf16.mxu0 0
    %353 = vmatmul.mubr.bf16.gmra.mrb[0].mxu0 %v297
    %v354 = vpop.f32.mrb[0].mxu0
    %v355 = vadd.f32 %v281, %v354
    %v356 = vpop.f32.mrb[0].mxu0
    %v357 = vpop.f32.mrb[0].mxu0
    %v358 = vadd.f32 %v281, %v357
    %v359 = vpop.f32.mrb[0].mxu0
    %360 = vmatprep.mubr.bf16.mxu0 0
    %361 = vmatmul.mubr.bf16.gmra.mrb[0].mxu0 %v300
    %v362 = vpop.f32.mrb[0].mxu0
    %v363 = vadd.f32 %v281, %v362
    %v364 = vpop.f32.mrb[0].mxu0
    %v365 = vpop.f32.mrb[0].mxu0
    %v366 = vadd.f32 %v281, %v365
    %v367 = vpop.f32.mrb[0].mxu0
    %368 = vmatprep.mubr.bf16.mxu0 0
    %369 = vmatmul.mubr.bf16.gmra.mrb[0].mxu0 %v303
    %v370 = vpop.f32.mrb[0].mxu0
    %v371 = vadd.f32 %v281, %v370
    %v372 = vpop.f32.mrb[0].mxu0
    %v373 = vpop.f32.mrb[0].mxu0
    %v374 = vadd.f32 %v281, %v373
    %v375 = vpop.f32.mrb[0].mxu0
    %376 = vmatprep.mubr.bf16.mxu0 0
    %377 = vmatmul.mubr.bf16.gmra.mrb[0].mxu0 %v306
    %v378 = vpop.f32.mrb[0].mxu0
    %v379 = vadd.f32 %v281, %v378
    %v380 = vpop.f32.mrb[0].mxu0
    %v381 = vpop.f32.mrb[0].mxu0
    %v382 = vadd.f32 %v281, %v381
    %v383 = vpop.f32.mrb[0].mxu0
    %384 = vmatprep.mubr.bf16.mxu0 0
    %385 = vmatmul.mubr.bf16.gmra.mrb[0].mxu0 %v309
    %v386 = vpop.f32.mrb[0].mxu0
    %v387 = vadd.f32 %v281, %v386
    %v388 = vpop.f32.mrb[0].mxu0
    %v389 = vpop.f32.mrb[0].mxu0
    %v390 = vadd.f32 %v281, %v389
    %v391 = vpop.f32.mrb[0].mxu0
    %392 = vmatprep.mubr.bf16.mxu0 0
    %393 = vmatmul.mubr.bf16.gmra.mrb[0].mxu0 %v312
    %v394 = vpop.f32.mrb[0].mxu0
    %v395 = vadd.f32 %v281, %v394
    %v396 = vpop.f32.mrb[0].mxu0
    %v397 = vpop.f32.mrb[0].mxu0
    %v398 = vadd.f32 %v281, %v397
    %v399 = vpop.f32.mrb[0].mxu0
    %400 = vmatprep.mubr.bf16.mxu0 0
    %401 = vmatmul.mubr.bf16.gmra.mrb[0].mxu0 %v315
    %v402 = vpop.f32.mrb[0].mxu0
    %v403 = vadd.f32 %v281, %v402
    %v404 = vpop.f32.mrb[0].mxu0
    %v405 = vpop.f32.mrb[0].mxu0
    %v406 = vadd.f32 %v281, %v405
    %v407 = vpop.f32.mrb[0].mxu0
    %408 = vmatprep.mubr.bf16.mxu0 0
    %409 = vmatmul.mubr.bf16.gmra.mrb[0].mxu0 %v318
    %v410 = vpop.f32.mrb[0].mxu0
    %v411 = vadd.f32 %v281, %v410
    %v412 = vpop.f32.mrb[0].mxu0
    %v413 = vpop.f32.mrb[0].mxu0
    %v414 = vadd.f32 %v281, %v413
    %v415 = vpop.f32.mrb[0].mxu0
    %416 = vdwg.mxu0
    %v417 = vmax.f32 %v355, 0.0
    %v418 = vmax.f32 %v358, 0.0
    %v419 = vmax.f32 %v363, 0.0
    %v420 = vmax.f32 %v366, 0.0
    %v421 = vmax.f32 %v371, 0.0
    %v422 = vmax.f32 %v374, 0.0
    %v423 = vmax.f32 %v379, 0.0
    %v424 = vmax.f32 %v382, 0.0
    %v425 = vmax.f32 %v387, 0.0
    %v426 = vmax.f32 %v390, 0.0
    %v427 = vmax.f32 %v395, 0.0
    %v428 = vmax.f32 %v398, 0.0
    %v429 = vmax.f32 %v403, 0.0
    %v430 = vmax.f32 %v406, 0.0
    %v431 = vmax.f32 %v411, 0.0
    %v432 = vmax.f32 %v414, 0.0
    %v433 = vpack.c.bf16 %v418, %v417
    %v434 = vpack.c.bf16 %v420, %v419
    %v435 = vpack.c.bf16 %v422, %v421
    %v436 = vpack.c.bf16 %v424, %v423
    %v437 = vpack.c.bf16 %v426, %v425
    %v438 = vpack.c.bf16 %v428, %v427
    %v439 = vpack.c.bf16 %v430, %v429
    %v440 = vpack.c.bf16 %v432, %v431
    %441 = vst [vmem:[#allocation2] sm:$0xff] %v433
    %442 = vst [vmem:[#allocation2 + $0x8] sm:$0xff] %v434
    %443 = vst [vmem:[#allocation2 + $0x10] sm:$0xff] %v435
    %444 = vst [vmem:[#allocation2 + $0x18] sm:$0xff] %v436
    %445 = vst [vmem:[#allocation2 + $0x20] sm:$0xff] %v437
    %446 = vst [vmem:[#allocation2 + $0x28] sm:$0xff] %v438
    %447 = vst [vmem:[#allocation2 + $0x30] sm:$0xff] %v439
    %448 = vst [vmem:[#allocation2 + $0x38] sm:$0xff] %v440
    %v449 = vld [vmem:[#allocation2] sm:$0xff]
    %v450 = vld [vmem:[#allocation2 + $0x8] sm:$0xff]
    %v451 = vld [vmem:[#allocation2 + $0x10] sm:$0xff]
    %v452 = vld [vmem:[#allocation2 + $0x18] sm:$0xff]
    %v453 = vld [vmem:[#allocation2 + $0x20] sm:$0xff]
    %v454 = vld [vmem:[#allocation2 + $0x28] sm:$0xff]
    %v455 = vld [vmem:[#allocation2 + $0x30] sm:$0xff]
    %v456 = vld [vmem:[#allocation2 + $0x38] sm:$0xff]
    %v457 = vld [vmem:[#allocation3] sm:$0xf]
    %v458 = vld [vmem:[#allocation3 + $0x4] sm:$0xf]
    %v459 = vld [vmem:[#allocation3 + $0x8] sm:$0xf]
    %v460 = vld [vmem:[#allocation3 + $0xc] sm:$0xf]
    %v461 = vld [vmem:[#allocation3 + $0x10] sm:$0xf]
    %v462 = vld [vmem:[#allocation3 + $0x14] sm:$0xf]
    %v463 = vld [vmem:[#allocation3 + $0x18] sm:$0xf]
    %v464 = vld [vmem:[#allocation3 + $0x1c] sm:$0xf]
    %v465 = vld [vmem:[#allocation3 + $0x20] sm:$0xf]
    %v466 = vld [vmem:[#allocation3 + $0x24] sm:$0xf]
    %v467 = vld [vmem:[#allocation3 + $0x28] sm:$0xf]
    %v468 = vld [vmem:[#allocation3 + $0x2c] sm:$0xf]
    %v469 = vld [vmem:[#allocation3 + $0x30] sm:$0xf]
    %v470 = vld [vmem:[#allocation3 + $0x34] sm:$0xf]
    %v471 = vld [vmem:[#allocation3 + $0x38] sm:$0xf]
    %v472 = vld [vmem:[#allocation3 + $0x3c] sm:$0xf]
    %v489 = vunpack.c.l.b16 %v457
    %v490 = vunpack.c.l.b16 %v458
    %v491 = vunpack.c.l.b16 %v459
    %v492 = vunpack.c.l.b16 %v460
    %v493 = vunpack.c.l.b16 %v461
    %v494 = vunpack.c.l.b16 %v462
    %v495 = vunpack.c.l.b16 %v463
    %v496 = vunpack.c.l.b16 %v464
    %v497 = vunpack.c.l.b16 %v465
    %v498 = vunpack.c.l.b16 %v466
    %v499 = vunpack.c.l.b16 %v467
    %v500 = vunpack.c.l.b16 %v468
    %v501 = vunpack.c.l.b16 %v469
    %v502 = vunpack.c.l.b16 %v470
    %v503 = vunpack.c.l.b16 %v471
    %v504 = vunpack.c.l.b16 %v472
    %v505 = vpack.c.b16 %v490, %v489
    %v506 = vpack.c.b16 %v492, %v491
    %v507 = vpack.c.b16 %v494, %v493
    %v508 = vpack.c.b16 %v496, %v495
    %v509 = vpack.c.b16 %v498, %v497
    %v510 = vpack.c.b16 %v500, %v499
    %v511 = vpack.c.b16 %v502, %v501
    %v512 = vpack.c.b16 %v504, %v503
    %521 = vmatprep.subr.bf16.mxu0 0
    %522 = vmatpush1.bf16.msra.mxu0 %v505
    %523 = vmatprep.subr.bf16.mxu0 0
    %524 = vmatpush1.bf16.msra.mxu0 %v506
    %525 = vmatprep.subr.bf16.mxu0 0
    %526 = vmatpush1.bf16.msra.mxu0 %v507
    %527 = vmatprep.subr.bf16.mxu0 0
    %528 = vmatpush1.bf16.msra.mxu0 %v508
    %529 = vmatprep.subr.bf16.mxu0 0
    %530 = vmatpush1.bf16.msra.mxu0 %v509
    %531 = vmatprep.subr.bf16.mxu0 0
    %532 = vmatpush1.bf16.msra.mxu0 %v510
    %533 = vmatprep.subr.bf16.mxu0 0
    %534 = vmatpush1.bf16.msra.mxu0 %v511
    %535 = vmatprep.subr.bf16.mxu0 0
    %536 = vmatpush1.bf16.msra.mxu0 %v512
    %537 = vmatprep.subr.bf16.mxu0 0
    %538 = vmatpush1.bf16.msra.mxu0 0
    %539 = vmatprep.subr.bf16.mxu0 0
    %540 = vmatpush1.bf16.msra.mxu0 0
    %541 = vmatprep.subr.bf16.mxu0 0
    %542 = vmatpush1.bf16.msra.mxu0 0
    %543 = vmatprep.subr.bf16.mxu0 0
    %544 = vmatpush1.bf16.msra.mxu0 0
    %545 = vmatprep.subr.bf16.mxu0 0
    %546 = vmatpush1.bf16.msra.mxu0 0
    %547 = vmatprep.subr.bf16.mxu0 0
    %548 = vmatpush1.bf16.msra.mxu0 0
    %549 = vmatprep.subr.bf16.mxu0 0
    %550 = vmatpush1.bf16.msra.mxu0 0
    %551 = vmatprep.subr.bf16.mxu0 0
    %552 = vmatpush1.bf16.msra.mxu0 0
    %553 = vmatprep.mubr.bf16.mxu0 0
    %554 = vmatmul.mubr.bf16.gmra.mrb[0].mxu0 %v449
    %v555 = vpop.f32.mrb[0].mxu0
    %v556 = vadd.f32 0.0, %v555
    %v557 = vpop.f32.mrb[0].mxu0
    %v558 = vpop.f32.mrb[0].mxu0
    %v559 = vadd.f32 0.0, %v558
    %v560 = vpop.f32.mrb[0].mxu0
    %561 = vmatprep.mubr.bf16.mxu0 0
    %562 = vmatmul.mubr.bf16.gmra.mrb[0].mxu0 %v450
    %v563 = vpop.f32.mrb[0].mxu0
    %v564 = vadd.f32 0.0, %v563
    %v565 = vpop.f32.mrb[0].mxu0
    %v566 = vpop.f32.mrb[0].mxu0
    %v567 = vadd.f32 0.0, %v566
    %v568 = vpop.f32.mrb[0].mxu0
    %569 = vmatprep.mubr.bf16.mxu0 0
    %570 = vmatmul.mubr.bf16.gmra.mrb[0].mxu0 %v451
    %v571 = vpop.f32.mrb[0].mxu0
    %v572 = vadd.f32 0.0, %v571
    %v573 = vpop.f32.mrb[0].mxu0
    %v574 = vpop.f32.mrb[0].mxu0
    %v575 = vadd.f32 0.0, %v574
    %v576 = vpop.f32.mrb[0].mxu0
    %577 = vmatprep.mubr.bf16.mxu0 0
    %578 = vmatmul.mubr.bf16.gmra.mrb[0].mxu0 %v452
    %v579 = vpop.f32.mrb[0].mxu0
    %v580 = vadd.f32 0.0, %v579
    %v581 = vpop.f32.mrb[0].mxu0
    %v582 = vpop.f32.mrb[0].mxu0
    %v583 = vadd.f32 0.0, %v582
    %v584 = vpop.f32.mrb[0].mxu0
    %585 = vmatprep.mubr.bf16.mxu0 0
    %586 = vmatmul.mubr.bf16.gmra.mrb[0].mxu0 %v453
    %v587 = vpop.f32.mrb[0].mxu0
    %v588 = vadd.f32 0.0, %v587
    %v589 = vpop.f32.mrb[0].mxu0
    %v590 = vpop.f32.mrb[0].mxu0
    %v591 = vadd.f32 0.0, %v590
    %v592 = vpop.f32.mrb[0].mxu0
    %593 = vmatprep.mubr.bf16.mxu0 0
    %594 = vmatmul.mubr.bf16.gmra.mrb[0].mxu0 %v454
    %v595 = vpop.f32.mrb[0].mxu0
    %v596 = vadd.f32 0.0, %v595
    %v597 = vpop.f32.mrb[0].mxu0
    %v598 = vpop.f32.mrb[0].mxu0
    %v599 = vadd.f32 0.0, %v598
    %v600 = vpop.f32.mrb[0].mxu0
    %601 = vmatprep.mubr.bf16.mxu0 0
    %602 = vmatmul.mubr.bf16.gmra.mrb[0].mxu0 %v455
    %v603 = vpop.f32.mrb[0].mxu0
    %v604 = vadd.f32 0.0, %v603
    %v605 = vpop.f32.mrb[0].mxu0
    %v606 = vpop.f32.mrb[0].mxu0
    %v607 = vadd.f32 0.0, %v606
    %v608 = vpop.f32.mrb[0].mxu0
    %609 = vmatprep.mubr.bf16.mxu0 0
    %610 = vmatmul.mubr.bf16.gmra.mrb[0].mxu0 %v456
    %v611 = vpop.f32.mrb[0].mxu0
    %v612 = vadd.f32 0.0, %v611
    %v613 = vpop.f32.mrb[0].mxu0
    %v614 = vpop.f32.mrb[0].mxu0
    %v615 = vadd.f32 0.0, %v614
    %v616 = vpop.f32.mrb[0].mxu0
    %617 = vdwg.mxu0
    %v618 = vpack.c.bf16 %v559, %v556
    %v619 = vpack.c.bf16 %v567, %v564
    %v620 = vpack.c.bf16 %v575, %v572
    %v621 = vpack.c.bf16 %v583, %v580
    %v622 = vpack.c.bf16 %v591, %v588
    %v623 = vpack.c.bf16 %v599, %v596
    %v624 = vpack.c.bf16 %v607, %v604
    %v625 = vpack.c.bf16 %v615, %v612
    %v626 = vld [vmem:[%s5] sm:$0x1]
    %v628 = vlaneseq
    %v629 = vshrl.u32 %v628, 7
    %v630 = vsub.s32 0, %v629
    %v631 = vrot.slane %v626, %v630
    %633 = vmatprep.subr.bf16.mxu0 0
    %634 = vmatpush1.bf16.msra.mxu0 %v618
    %635 = vmatprep.subr.bf16.mxu0 0
    %636 = vmatpush1.bf16.msra.mxu0 %v619
    %637 = vmatprep.subr.bf16.mxu0 0
    %638 = vmatpush1.bf16.msra.mxu0 %v620
    %639 = vmatprep.subr.bf16.mxu0 0
    %640 = vmatpush1.bf16.msra.mxu0 %v621
    %641 = vmatprep.subr.bf16.mxu0 0
    %642 = vmatpush1.bf16.msra.mxu0 %v622
    %643 = vmatprep.subr.bf16.mxu0 0
    %644 = vmatpush1.bf16.msra.mxu0 %v623
    %645 = vmatprep.subr.bf16.mxu0 0
    %646 = vmatpush1.bf16.msra.mxu0 %v624
    %647 = vmatprep.subr.bf16.mxu0 0
    %648 = vmatpush1.bf16.msra.mxu0 %v625
    %649 = vmatprep.subr.bf16.mxu0 0
    %650 = vmatpush1.bf16.msra.mxu0 0
    %651 = vmatprep.subr.bf16.mxu0 0
    %652 = vmatpush1.bf16.msra.mxu0 0
    %653 = vmatprep.subr.bf16.mxu0 0
    %654 = vmatpush1.bf16.msra.mxu0 0
    %655 = vmatprep.subr.bf16.mxu0 0
    %656 = vmatpush1.bf16.msra.mxu0 0
    %657 = vmatprep.subr.bf16.mxu0 0
    %658 = vmatpush1.bf16.msra.mxu0 0
    %659 = vmatprep.subr.bf16.mxu0 0
    %660 = vmatpush1.bf16.msra.mxu0 0
    %661 = vmatprep.subr.bf16.mxu0 0
    %662 = vmatpush1.bf16.msra.mxu0 0
    %663 = vmatprep.subr.bf16.mxu0 0
    %664 = vmatpush1.bf16.msra.mxu0 0
    %665 = vmatprep.mubr.bf16.mxu0 0
    %666 = vmatmul.mubr.bf16.gmra.mrb[0].mxu0 %v103
    %v667 = vpop.f32.mrb[0].mxu0
    %v668 = vadd.f32 %v631, %v667
    %v669 = vpop.f32.mrb[0].mxu0
    %v670 = vpop.f32.mrb[0].mxu0
    %v671 = vadd.f32 %v631, %v670
    %v672 = vpop.f32.mrb[0].mxu0
    %673 = vmatprep.mubr.bf16.mxu0 0
    %674 = vmatmul.mubr.bf16.gmra.mrb[0].mxu0 %v104
    %v675 = vpop.f32.mrb[0].mxu0
    %v676 = vadd.f32 %v631, %v675
    %v677 = vpop.f32.mrb[0].mxu0
    %v678 = vpop.f32.mrb[0].mxu0
    %v679 = vadd.f32 %v631, %v678
    %v680 = vpop.f32.mrb[0].mxu0
    %681 = vmatprep.mubr.bf16.mxu0 0
    %682 = vmatmul.mubr.bf16.gmra.mrb[0].mxu0 %v105
    %v683 = vpop.f32.mrb[0].mxu0
    %v684 = vadd.f32 %v631, %v683
    %v685 = vpop.f32.mrb[0].mxu0
    %v686 = vpop.f32.mrb[0].mxu0
    %v687 = vadd.f32 %v631, %v686
    %v688 = vpop.f32.mrb[0].mxu0
    %689 = vmatprep.mubr.bf16.mxu0 0
    %690 = vmatmul.mubr.bf16.gmra.mrb[0].mxu0 %v106
    %v691 = vpop.f32.mrb[0].mxu0
    %v692 = vadd.f32 %v631, %v691
    %v693 = vpop.f32.mrb[0].mxu0
    %v694 = vpop.f32.mrb[0].mxu0
    %v695 = vadd.f32 %v631, %v694
    %v696 = vpop.f32.mrb[0].mxu0
    %697 = vmatprep.mubr.bf16.mxu0 0
    %698 = vmatmul.mubr.bf16.gmra.mrb[0].mxu0 %v107
    %v699 = vpop.f32.mrb[0].mxu0
    %v700 = vadd.f32 %v631, %v699
    %v701 = vpop.f32.mrb[0].mxu0
    %v702 = vpop.f32.mrb[0].mxu0
    %v703 = vadd.f32 %v631, %v702
    %v704 = vpop.f32.mrb[0].mxu0
    %705 = vmatprep.mubr.bf16.mxu0 0
    %706 = vmatmul.mubr.bf16.gmra.mrb[0].mxu0 %v108
    %v707 = vpop.f32.mrb[0].mxu0
    %v708 = vadd.f32 %v631, %v707
    %v709 = vpop.f32.mrb[0].mxu0
    %v710 = vpop.f32.mrb[0].mxu0
    %v711 = vadd.f32 %v631, %v710
    %v712 = vpop.f32.mrb[0].mxu0
    %713 = vmatprep.mubr.bf16.mxu0 0
    %714 = vmatmul.mubr.bf16.gmra.mrb[0].mxu0 %v109
    %v715 = vpop.f32.mrb[0].mxu0
    %v716 = vadd.f32 %v631, %v715
    %v717 = vpop.f32.mrb[0].mxu0
    %v718 = vpop.f32.mrb[0].mxu0
    %v719 = vadd.f32 %v631, %v718
    %v720 = vpop.f32.mrb[0].mxu0
    %721 = vmatprep.mubr.bf16.mxu0 0
    %722 = vmatmul.mubr.bf16.gmra.mrb[0].mxu0 %v110
    %v723 = vpop.f32.mrb[0].mxu0
    %v724 = vadd.f32 %v631, %v723
    %v725 = vpop.f32.mrb[0].mxu0
    %v726 = vpop.f32.mrb[0].mxu0
    %v727 = vadd.f32 %v631, %v726
    %v728 = vpop.f32.mrb[0].mxu0
    %729 = vdwg.mxu0
    %730 = vst [vmem:[#allocation6] sm:$0xff] %v668
    %731 = vst [vmem:[#allocation6 + $0x8] sm:$0xff] %v671
    %732 = vst [vmem:[#allocation6 + $0x10] sm:$0xff] %v676
    %733 = vst [vmem:[#allocation6 + $0x18] sm:$0xff] %v679
    %734 = vst [vmem:[#allocation6 + $0x20] sm:$0xff] %v684
    %735 = vst [vmem:[#allocation6 + $0x28] sm:$0xff] %v687
    %736 = vst [vmem:[#allocation6 + $0x30] sm:$0xff] %v692
    %737 = vst [vmem:[#allocation6 + $0x38] sm:$0xff] %v695
    %738 = vst [vmem:[#allocation6 + $0x40] sm:$0xff] %v700
    %739 = vst [vmem:[#allocation6 + $0x48] sm:$0xff] %v703
    %740 = vst [vmem:[#allocation6 + $0x50] sm:$0xff] %v708
    %741 = vst [vmem:[#allocation6 + $0x58] sm:$0xff] %v711
    %742 = vst [vmem:[#allocation6 + $0x60] sm:$0xff] %v716
    %743 = vst [vmem:[#allocation6 + $0x68] sm:$0xff] %v719
    %744 = vst [vmem:[#allocation6 + $0x70] sm:$0xff] %v724
    %745 = vst [vmem:[#allocation6 + $0x78] sm:$0xff] %v727
    // Predicated region
    $region30: #{tpu_custom_call.1} parent=1 // pred_check
      _
    $region31: #{tpu_custom_call.1} parent=1 // pred_check_branch
      %747 = sbr.rel (0) target = $region33
    $region32: #{tpu_custom_call.1} parent=1 // pred_region
      %s749 = ssub.s32 2048, 2048
      %750 = vsyncadd [#allocation5], %s749
      %s751 = sshll.u32 [#allocation6], 4
      %s752 = int_to_ptr.vmem [resolvable:$true] %s751
      %757 = dma.vmem_to_hbm [thread:$0]  %s752, 2048, %s6, [#allocation5], 128, 128, 8
    $region33: #{tpu_custom_call.1} parent=1 // pred_fallthru
      _
    // Predicated region
    $region34: #{tpu_custom_call.1} parent=1 // pred_check
      _
    $region35: #{tpu_custom_call.1} parent=1 // pred_check_branch
      %759 = sbr.rel (0) target = $region37
    $region36: #{tpu_custom_call.1} parent=1 // pred_region
      %760 = dma.done [#allocation5], 2048
    $region37: #{tpu_custom_call.1} parent=1 // pred_fallthru
      _
    %761 = vsyncpa [#allocation4], 1
    %762 = vsyncpa [#allocation5], 1

</llo_original>
